<compile_context>
chip_gen: v5e
topology: v5e:2x2
jax: 0.10.0
libtpu: 0.0.40
codegen_flags: <defaults>
</compile_context>

<pallas_src>
import math

import jax
import jax.numpy as jnp
from jax.experimental import pallas as pl
from jax.experimental.pallas import tpu as pltpu


def make_ffm_kernel(num_fields: int, vocab: int):
    """Build the kernel with num_fields / vocab baked in (loops unrolled)."""
    F, V = num_fields, vocab
    FV = F * V

    def ffm_kernel(idx_ref, el_ref, er_ref, out_ref):
        # idx_ref: (TB, F)        int32 -- indices already shifted by field offsets
        # el_ref : (F*V, PDpad)   f32   -- "left"  pair-operand table (VMEM resident)
        # er_ref : (F*V, PDpad)   f32   -- "right" pair-operand table (VMEM resident)
        # out_ref: (TB, PDpad)    f32   -- lane-dense packed pairwise products
        idx = idx_ref[...]
        TB = idx.shape[0]

        # Stacked one-hot over the concatenated per-field index space:
        #   OH[b, f*V + idx[b, f]] = 1
        # One hoisted iota + F cheap VPU compares (field ranges are disjoint,
        # so a plain add assembles the multi-hot row).
        iota_fv = jax.lax.broadcasted_iota(jnp.int32, (TB, FV), 1)
        oh = (iota_fv == idx[:, 0:1]).astype(jnp.float32)
        for f in range(1, F):
            oh = oh + (iota_fv == (idx[:, f:f + 1] + f * V)).astype(jnp.float32)

        # Two MXU matmuls produce the pair operands directly:
        #   left [:, p*D:(p+1)*D] = Embedding_j(x[:, i])   (pair p = (i, j), i < j)
        #   right[:, p*D:(p+1)*D] = Embedding_i(x[:, j])
        left = jnp.dot(oh, el_ref[...], preferred_element_type=jnp.float32)
        right = jnp.dot(oh, er_ref[...], preferred_element_type=jnp.float32)

        # Single wide VPU multiply + ONE lane-dense (multiple-of-128) store.
        out_ref[...] = left * right

    return ffm_kernel


def _build_pair_tables(emb_tables: jax.Array, pd_pad: int):
    """(F, V, D) per-field tables -> E_L, E_R of shape (F*V, pd_pad) such that
         (OH @ E_L)[:, p*D:(p+1)*D] == Embedding_j(x[:, i])
         (OH @ E_R)[:, p*D:(p+1)*D] == Embedding_i(x[:, j])
       for pair p = (i, j), i < j, in the PyTorch nested-loop order."""
    F, V, D = emb_tables.shape
    e_l = jnp.zeros((F * V, pd_pad), dtype=jnp.float32)
    e_r = jnp.zeros((F * V, pd_pad), dtype=jnp.float32)
    p = 0
    for i in range(F - 1):
        for j in range(i + 1, F):
            # Left operand of pair p: table j, addressed by field column i.
            e_l = e_l.at[i * V:(i + 1) * V, p * D:(p + 1) * D].set(emb_tables[j])
            # Right operand of pair p: table i, addressed by field column j.
            e_r = e_r.at[j * V:(j + 1) * V, p * D:(p + 1) * D].set(emb_tables[i])
            p += 1
    return e_l, e_r


def ffm_forward(idx_offset: jax.Array, emb_tables: jax.Array,
                batch_tile: int | None = None) -> jax.Array:
    """idx_offset: (B, F) int indices already shifted by field offsets.
       emb_tables: (F, V, D) float32 stacked per-field embedding tables.
       Returns (B, P, D) with P = F*(F-1)/2, matching the PyTorch module."""
    idx_offset = idx_offset.astype(jnp.int32)
    B, F = idx_offset.shape
    F2, V, D = emb_tables.shape
    assert F2 == F
    P = F * (F - 1) // 2
    FV = F * V
    # Pad the packed output lane width up to a multiple of 128 so every store
    # is an unmasked full-vreg vst; padding columns are zero and sliced off.
    pd_pad = max(128, ((P * D + 127) // 128) * 128)

    # Batch tile: large (amortizes ~0.35us/step overhead, fills 256 MXU rows on
    # v6e/v7x), multiple of 8 sublanes.
    if batch_tile is None:
        batch_tile = 512
    tb = max(1, min(batch_tile, B))
    if B >= 8:
        tb = max(8, (tb // 8) * 8)
    # v7x megacore: guarantee >= 2 grid steps when the batch allows it so the
    # "parallel" batch axis can actually shard across both TensorCores.
    if B >= 16 and pl.cdiv(B, tb) < 2:
        tb = max(8, ((pl.cdiv(B, 2) + 7) // 8) * 8)
    n_blocks = pl.cdiv(B, tb)
    Bp = n_blocks * tb
    if Bp != B:
        idx_offset = jnp.pad(idx_offset, ((0, Bp - B), (0, 0)))

    # Pair-operand tables, built once in plain JAX (glue, not kernel work).
    e_l, e_r = _build_pair_tables(emb_tables.astype(jnp.float32), pd_pad)

    # Advisory cost estimate for XLA scheduling around the custom call.
    flops = 2 * 2 * Bp * FV * pd_pad                      # two MXU matmuls / row
    bytes_accessed = 4 * (Bp * F + 2 * FV * pd_pad + Bp * pd_pad)
    cost = pl.CostEstimate(flops=flops, transcendentals=0,
                           bytes_accessed=bytes_accessed)

    # Explicit scoped-VMEM budget: double-buffered idx/out tiles, resident
    # (but still 2x-allocated) E_L/E_R, plus in-kernel temporaries.
    vmem_est = 4 * (2 * tb * F + 2 * 2 * FV * pd_pad + 2 * tb * pd_pad
                    + tb * FV + 3 * tb * pd_pad)
    vmem_limit = int(min(64 * 2**20, max(2 * vmem_est, 32 * 2**20)))

    out_flat = pl.pallas_call(
        make_ffm_kernel(F, V),
        out_shape=jax.ShapeDtypeStruct((Bp, pd_pad), jnp.float32),
        grid=(n_blocks,),
        in_specs=[
            # Pipelined (double-buffered) index tiles.
            pl.BlockSpec((tb, F), lambda b: (b, 0)),
            # Constant block index -> tables DMA'd once, stay VMEM-resident.
            pl.BlockSpec((FV, pd_pad), lambda b: (0, 0)),
            pl.BlockSpec((FV, pd_pad), lambda b: (0, 0)),
        ],
        out_specs=pl.BlockSpec((tb, pd_pad), lambda b: (b, 0)),
        compiler_params=pltpu.CompilerParams(
            dimension_semantics=("parallel",),
            vmem_limit_bytes=vmem_limit),
        cost_estimate=cost,
    )(idx_offset, e_l, e_r)

    return out_flat[:B, :P * D].reshape(B, P, D)


def ffm_reference(idx_offset: jax.Array, emb_tables: jax.Array) -> jax.Array:
    """Plain-JAX reference mirroring the PyTorch module exactly."""
    F = idx_offset.shape[1]
    xs = [emb_tables[i][idx_offset] for i in range(F)]   # each (B, F, D)
    ix = []
    for i in range(F - 1):
        for j in range(i + 1, F):
            ix.append(xs[j][:, i] * xs[i][:, j])
    return jnp.stack(ix, axis=1)


if __name__ == "__main__":
    # Module config (small, consistent with the forward's shape contract).
    field_dims = (3, 4, 5, 6)          # len = num_fields = 4
    num_fields = len(field_dims)
    vocab = sum(field_dims)            # 18
    embed_dim = 32
    batch = 64                         # exercises the batch grid (2 tiles -> megacore)

    key = jax.random.PRNGKey(0)
    k_idx, k_emb = jax.random.split(key)

    # Deterministic Xavier-uniform init for each embedding table (vocab, embed_dim).
    bound = math.sqrt(6.0 / (vocab + embed_dim))
    emb_tables = jax.random.uniform(
        k_emb, (num_fields, vocab, embed_dim),
        minval=-bound, maxval=bound, dtype=jnp.float32)

    # Raw per-field categorical indices x: (batch, num_fields), valid within each field.
    field_dims_arr = jnp.asarray(field_dims, dtype=jnp.int32)
    u = jax.random.randint(k_idx, (batch, num_fields), 0, 10_000, dtype=jnp.int32)
    x = u % field_dims_arr[None, :]

    # offsets = (0, cumsum(field_dims)[:-1])  — glue, done in plain JAX.
    offsets = jnp.concatenate(
        [jnp.zeros((1,), jnp.int32), jnp.cumsum(field_dims_arr)[:-1]])
    idx_offset = x + offsets[None, :]

    out = ffm_forward(idx_offset, emb_tables)   # default tile -> grid = (2,)
    out = jax.block_until_ready(out)

    ref = ffm_reference(idx_offset, emb_tables)
    assert out.shape == (batch, num_fields * (num_fields - 1) // 2, embed_dim)
    assert jnp.allclose(out, ref, atol=1e-5, rtol=1e-5)

    print("KERNEL_OK")
</pallas_src>

<mosaic_0001>
module attributes {stable_mosaic.version = 11 : i64} {
  func.func @ffm_kernel(%arg0: i32, %arg1: memref<32x4xi32, #tpu.memory_space<vmem>>, %arg2: memref<72x256xf32, #tpu.memory_space<vmem>>, %arg3: memref<72x256xf32, #tpu.memory_space<vmem>>, %arg4: memref<32x256xf32, #tpu.memory_space<vmem>>) attributes {dimension_semantics = [#tpu.dimension_semantics<parallel>], iteration_bounds = array<i64: 2>, scalar_prefetch = 0 : i64, scratch_operands = 0 : i64, tpu.core_type = #tpu.core_type<tc>, window_params = [{transform_indices = @transform_0, window_bounds = array<i64: 32, 4>}, {pipeline_mode = #tpu.pipeline_mode<synchronous>, transform_indices = @transform_1, window_bounds = array<i64: 72, 256>}, {pipeline_mode = #tpu.pipeline_mode<synchronous>, transform_indices = @transform_2, window_bounds = array<i64: 72, 256>}, {transform_indices = @transform_3, window_bounds = array<i64: 32, 256>}]} {
    %c0 = arith.constant 0 : index
    %c0_0 = arith.constant 0 : index
    %0 = vector.load %arg1[%c0, %c0_0] : memref<32x4xi32, #tpu.memory_space<vmem>>, vector<32x4xi32>
    %1 = tpu.iota {dimensions = array<i32: 1>} : vector<32x72xi32>
    %2 = vector.extract_strided_slice %0 {offsets = [0, 0], sizes = [32, 1], strides = [1, 1]} : vector<32x4xi32> to vector<32x1xi32>
    %3 = vector.broadcast %2 : vector<32x1xi32> to vector<32x72xi32>
    %4 = arith.cmpi eq, %1, %3 : vector<32x72xi32>
    %5 = arith.extui %4 : vector<32x72xi1> to vector<32x72xi32>
    %6 = arith.sitofp %5 : vector<32x72xi32> to vector<32x72xf32>
    %7 = vector.extract_strided_slice %0 {offsets = [0, 1], sizes = [32, 1], strides = [1, 1]} : vector<32x4xi32> to vector<32x1xi32>
    %c18_i32 = arith.constant 18 : i32
    %8 = vector.broadcast %c18_i32 : i32 to vector<32x1xi32>
    %9 = arith.addi %7, %8 : vector<32x1xi32>
    %10 = vector.broadcast %9 : vector<32x1xi32> to vector<32x72xi32>
    %11 = arith.cmpi eq, %1, %10 : vector<32x72xi32>
    %12 = arith.extui %11 : vector<32x72xi1> to vector<32x72xi32>
    %13 = arith.sitofp %12 : vector<32x72xi32> to vector<32x72xf32>
    %14 = arith.addf %6, %13 : vector<32x72xf32>
    %15 = vector.extract_strided_slice %0 {offsets = [0, 2], sizes = [32, 1], strides = [1, 1]} : vector<32x4xi32> to vector<32x1xi32>
    %c36_i32 = arith.constant 36 : i32
    %16 = vector.broadcast %c36_i32 : i32 to vector<32x1xi32>
    %17 = arith.addi %15, %16 : vector<32x1xi32>
    %18 = vector.broadcast %17 : vector<32x1xi32> to vector<32x72xi32>
    %19 = arith.cmpi eq, %1, %18 : vector<32x72xi32>
    %20 = arith.extui %19 : vector<32x72xi1> to vector<32x72xi32>
    %21 = arith.sitofp %20 : vector<32x72xi32> to vector<32x72xf32>
    %22 = arith.addf %14, %21 : vector<32x72xf32>
    %23 = vector.extract_strided_slice %0 {offsets = [0, 3], sizes = [32, 1], strides = [1, 1]} : vector<32x4xi32> to vector<32x1xi32>
    %c54_i32 = arith.constant 54 : i32
    %24 = vector.broadcast %c54_i32 : i32 to vector<32x1xi32>
    %25 = arith.addi %23, %24 : vector<32x1xi32>
    %26 = vector.broadcast %25 : vector<32x1xi32> to vector<32x72xi32>
    %27 = arith.cmpi eq, %1, %26 : vector<32x72xi32>
    %28 = arith.extui %27 : vector<32x72xi1> to vector<32x72xi32>
    %29 = arith.sitofp %28 : vector<32x72xi32> to vector<32x72xf32>
    %30 = arith.addf %22, %29 : vector<32x72xf32>
    %c0_1 = arith.constant 0 : index
    %c0_2 = arith.constant 0 : index
    %31 = vector.load %arg2[%c0_1, %c0_2] : memref<72x256xf32, #tpu.memory_space<vmem>>, vector<72x256xf32>
    %cst = arith.constant dense<0.000000e+00> : vector<32x256xf32>
    %32 = tpu.matmul %30, %31, %cst {dimension_numbers = #tpu.dot_dimension_numbers<[1], [0], [0], [1], [0, 0, 1, 1], [], []>} : vector<32x72xf32>, vector<72x256xf32>, vector<32x256xf32> -> vector<32x256xf32>
    %c0_3 = arith.constant 0 : index
    %c0_4 = arith.constant 0 : index
    %33 = vector.load %arg3[%c0_3, %c0_4] : memref<72x256xf32, #tpu.memory_space<vmem>>, vector<72x256xf32>
    %cst_5 = arith.constant dense<0.000000e+00> : vector<32x256xf32>
    %34 = tpu.matmul %30, %33, %cst_5 {dimension_numbers = #tpu.dot_dimension_numbers<[1], [0], [0], [1], [0, 0, 1, 1], [], []>} : vector<32x72xf32>, vector<72x256xf32>, vector<32x256xf32> -> vector<32x256xf32>
    %35 = arith.mulf %32, %34 : vector<32x256xf32>
    %c0_6 = arith.constant 0 : index
    %c0_7 = arith.constant 0 : index
    %36 = vector.load %arg4[%c0_6, %c0_7] : memref<32x256xf32, #tpu.memory_space<vmem>>, vector<32x256xf32>
    tpu.vector_store %arg4[%c0_6, %c0_7], %35 {strides = array<i32>} : memref<32x256xf32, #tpu.memory_space<vmem>>, vector<32x256xf32>,
    return
  }
  func.func @transform_0(%arg0: i32) -> (i32, i32) {
    %c0_i32 = arith.constant 0 : i32
    %c0_i32_0 = arith.constant 0 : i32
    return %arg0, %c0_i32 : i32, i32
  }
  func.func @transform_1(%arg0: i32) -> (i32, i32) {
    %c0_i32 = arith.constant 0 : i32
    %c0_i32_0 = arith.constant 0 : i32
    %c0_i32_1 = arith.constant 0 : i32
    return %c0_i32, %c0_i32_0 : i32, i32
  }
  func.func @transform_2(%arg0: i32) -> (i32, i32) {
    %c0_i32 = arith.constant 0 : i32
    %c0_i32_0 = arith.constant 0 : i32
    %c0_i32_1 = arith.constant 0 : i32
    return %c0_i32, %c0_i32_0 : i32, i32
  }
  func.func @transform_3(%arg0: i32) -> (i32, i32) {
    %c0_i32 = arith.constant 0 : i32
    %c0_i32_0 = arith.constant 0 : i32
    return %arg0, %c0_i32 : i32, i32
  }
}

</mosaic_0001>

<llo_original>
// kernel: tpu_custom_call.1
$region0: #{tpu_custom_call.1}
  #allocation0 [shape = 'u32[]', space=smem, size = 0x4, offset = 0x4, fixed_abs, tag = 'smem constant byte address 0x4 - core index']
  #allocation1 [shape = 'u32[72,128]{1,0:T(1,128)}', space=vmem, size = 0x9000, scoped, tag = 'internal scratch']
  %s0 = inlined_call_operand.vmem [shape: s32[64,4], index: 0, kind: input, shape index: {}]
  %s1 = inlined_call_operand.hbm [shape: f32[72,256], index: 1, kind: input, shape index: {}]
  %s2 = inlined_call_operand.hbm [shape: f32[72,256], index: 2, kind: input, shape index: {}]
  %s3 = inlined_call_operand.hbm [shape: f32[64,256], index: 3, kind: output, shape index: {}]
  %s4 = sld [smem:[#allocation0]]
  $region53: #{tpu_custom_call.1} parent=0
    _
  %s6 = ssub.s32 1, %s4
  %s7 = scalar_select 0, %s6, %s4
  $region1: #{tpu_custom_call.1} parent=0
    #allocation2 [shape = 'u8[73728]{0}', space=vmem, size = 0x12000, scoped, tag = 'input window, operand 1, single buffered']
    #allocation3 [shape = 's32[2]{0}', space=sflag, size = 0x8, scoped, tag = 'scoped memory for tpu_custom_call.1']
    #allocation4 [shape = 's32[2]{0}', space=sflag, size = 0x8, scoped, tag = 'scoped memory for tpu_custom_call.1']
    #allocation5 [shape = 'u8[73728]{0}', space=vmem, size = 0x12000, scoped, tag = 'input window, operand 2, single buffered']
    #allocation6 [shape = 's32[1]{0}', space=sflag, size = 0x4, scoped, tag = 'scoped memory for tpu_custom_call.1']
    #allocation7 [shape = 'u8[65536]{0}', space=vmem, size = 0x10000, scoped, tag = 'output window, operand 0']
    %8 = vsyncpa [#allocation3], 0
    %9 = vsyncpa [#allocation6], 0
    %10 = vsyncpa [#allocation4], 0
    %s11 = scalar_lea.sflag [#allocation4], 1
    %12 = vsyncpa %s11, 0
    loop: start=0, step=1, limit=4
    $region2: #{tpu_custom_call.1} parent=1 // loop_pre_header
      _
    $region3: #{tpu_custom_call.1} parent=1 // loop_header
      %s14 = sphi 0, %s18
      %p15 = scmp.ge.s32.totalorder %s14, 4
      %s24 = sphi 0, %s26
      %s27 = sphi 0, %s24
      %s28 = sphi 0, %s27
      %s44 = sphi 0, %s28
      %s48 = sphi 0, %s48
      %s50 = sphi 0, %s48
      %s51 = sphi 0, %s50
      %s65 = sphi 0, %s51
      %s69 = sphi 0, %s69
      %s71 = sphi 0, %s69
      %s72 = sphi 0, %s71
      %s86 = sphi 0, %s72
      %s92 = sphi 0, %s94
      %s95 = sphi 0, %s92
      %s96 = sphi 0, %s95
      %s112 = sphi 0, %s96
    $region4: #{tpu_custom_call.1} parent=1 // loop_header_branch
      %17 = sbr.rel (%p15) target = $region8
    $region5: #{tpu_custom_call.1} parent=1 // loop_body
      %s19 = ssub.s32 %s14, 1
      %s20 = ssub.s32 %s14, 2
      %s21 = sadd.s32 %s14, 1
      %s22 = ssub.s32 %s14, %s21
      %p23 = scmp.eq.s32.totalorder %s22, 0
      %s25 = sadd.s32 %s24, 1
      %s26 = scalar_select %p23, %s24, %s25
      %p29 = pneg %p23
      %p30 = scmp.eq.s32.totalorder %s14, 1
      %p31 = por %p29, %p30
      %p32 = scmp.ne.s32.totalorder %s24, %s27
      %p33 = scmp.eq.s32.totalorder %s14, 0
      %p34 = por %p32, %p33
      %p35 = scmp.ne.s32.totalorder %s24, %s27
      %p36 = scmp.eq.s32.totalorder %s19, 1
      %p37 = por %p35, %p36
      %p38 = scmp.ne.s32.totalorder %s27, %s28
      %p39 = scmp.eq.s32.totalorder %s19, 0
      %p40 = por %p38, %p39
      %p41 = scmp.ne.s32.totalorder %s27, %s28
      %p42 = scmp.eq.s32.totalorder %s20, 1
      %p43 = por %p41, %p42
      %p45 = scmp.ne.s32.totalorder %s28, %s44
      %p46 = scmp.eq.s32.totalorder %s20, 0
      %p47 = por %p45, %p46
      %s49 = sadd.s32 %s48, 1
      %p52 = scmp.eq.s32.totalorder %s14, 1
      %p53 = scmp.ne.s32.totalorder %s48, %s50
      %p54 = scmp.eq.s32.totalorder %s14, 0
      %p55 = por %p53, %p54
      %p56 = scmp.ne.s32.totalorder %s48, %s50
      %p57 = scmp.eq.s32.totalorder %s19, 1
      %p58 = por %p56, %p57
      %p59 = scmp.ne.s32.totalorder %s50, %s51
      %p60 = scmp.eq.s32.totalorder %s19, 0
      %p61 = por %p59, %p60
      %p62 = scmp.ne.s32.totalorder %s50, %s51
      %p63 = scmp.eq.s32.totalorder %s20, 1
      %p64 = por %p62, %p63
      %p66 = scmp.ne.s32.totalorder %s51, %s65
      %p67 = scmp.eq.s32.totalorder %s20, 0
      %p68 = por %p66, %p67
      %s70 = sadd.s32 %s69, 1
      %p73 = scmp.eq.s32.totalorder %s14, 1
      %p74 = scmp.ne.s32.totalorder %s69, %s71
      %p75 = scmp.eq.s32.totalorder %s14, 0
      %p76 = por %p74, %p75
      %p77 = scmp.ne.s32.totalorder %s69, %s71
      %p78 = scmp.eq.s32.totalorder %s19, 1
      %p79 = por %p77, %p78
      %p80 = scmp.ne.s32.totalorder %s71, %s72
      %p81 = scmp.eq.s32.totalorder %s19, 0
      %p82 = por %p80, %p81
      %p83 = scmp.ne.s32.totalorder %s71, %s72
      %p84 = scmp.eq.s32.totalorder %s20, 1
      %p85 = por %p83, %p84
      %p87 = scmp.ne.s32.totalorder %s72, %s86
      %p88 = scmp.eq.s32.totalorder %s20, 0
      %p89 = por %p87, %p88
      %s90 = ssub.s32 %s14, %s21
      %p91 = scmp.eq.s32.totalorder %s90, 0
      %s93 = sadd.s32 %s92, 1
      %s94 = scalar_select %p91, %s92, %s93
      %p97 = pneg %p91
      %p98 = scmp.eq.s32.totalorder %s14, 1
      %p99 = por %p97, %p98
      %p100 = scmp.ne.s32.totalorder %s92, %s95
      %p101 = scmp.eq.s32.totalorder %s14, 0
      %p102 = por %p100, %p101
      %p103 = scmp.ne.s32.totalorder %s92, %s95
      %p104 = scmp.eq.s32.totalorder %s19, 1
      %p105 = por %p103, %p104
      %p106 = scmp.ne.s32.totalorder %s95, %s96
      %p107 = scmp.eq.s32.totalorder %s19, 0
      %p108 = por %p106, %p107
      %p109 = scmp.ne.s32.totalorder %s95, %s96
      %p110 = scmp.eq.s32.totalorder %s20, 1
      %p111 = por %p109, %p110
      %p113 = scmp.ne.s32.totalorder %s96, %s112
      %p114 = scmp.eq.s32.totalorder %s20, 0
      %p115 = por %p113, %p114
      %p116 = scmp.le.s32.totalorder 1, %s14
      %p117 = scmp.lt.s32.totalorder %s14, 3
      %p118 = pnand %p116, %p117
      %p119 = pneg %p118
      // Predicated region
      $region9: #{tpu_custom_call.1} parent=5 // pred_check
        _
      $region10: #{tpu_custom_call.1} parent=5 // pred_check_branch
        %121 = sbr.rel (%p118) target = $region12
      $region11: #{tpu_custom_call.1} parent=5 // pred_region
        %s122 = ssub.s32 %s14, 1
        // Predicated region
        $region13: #{tpu_custom_call.1} parent=11 // pred_check
          %p123 = pneg %p61
        $region14: #{tpu_custom_call.1} parent=11 // pred_check_branch
          %125 = sbr.rel (%p123) target = $region16
        $region15: #{tpu_custom_call.1} parent=11 // pred_region
          %127 = vsyncadd [#allocation3], 0
          %s128 = sshll.u32 %s1, 4
          %s129 = int_to_ptr.hbm [resolvable:$true] %s128
          %s130 = sshll.u32 [#allocation2], 4
          %s131 = int_to_ptr.vmem [resolvable:$true] %s130
          %136 = dma.hbm_to_vmem [thread:$0]  %s129, 2304, %s131, [#allocation3], 256, 256, 16
        $region16: #{tpu_custom_call.1} parent=11 // pred_fallthru
          _
        // Predicated region
        $region17: #{tpu_custom_call.1} parent=11 // pred_check
          %p137 = pneg %p82
        $region18: #{tpu_custom_call.1} parent=11 // pred_check_branch
          %139 = sbr.rel (%p137) target = $region20
        $region19: #{tpu_custom_call.1} parent=11 // pred_region
          %141 = vsyncadd [#allocation6], 0
          %s142 = sshll.u32 %s2, 4
          %s143 = int_to_ptr.hbm [resolvable:$true] %s142
          %s144 = sshll.u32 [#allocation5], 4
          %s145 = int_to_ptr.vmem [resolvable:$true] %s144
          %150 = dma.hbm_to_vmem [thread:$0]  %s143, 2304, %s145, [#allocation6], 256, 256, 16
        $region20: #{tpu_custom_call.1} parent=11 // pred_fallthru
          _
      $region12: #{tpu_custom_call.1} parent=5 // pred_fallthru
        _
      %p151 = scmp.lt.s32.totalorder %s14, 2
      // Predicated region
      $region21: #{tpu_custom_call.1} parent=5 // pred_check
        %p152 = pneg %p151
      $region22: #{tpu_custom_call.1} parent=5 // pred_check_branch
        %154 = sbr.rel (%p152) target = $region24
      $region23: #{tpu_custom_call.1} parent=5 // pred_region
        // Predicated region
        $region25: #{tpu_custom_call.1} parent=23 // pred_check
          %p155 = pneg %p34
        $region26: #{tpu_custom_call.1} parent=23 // pred_check_branch
          %157 = sbr.rel (%p155) target = $region28
        $region27: #{tpu_custom_call.1} parent=23 // pred_region
          %s158 = smul.u32 4, %s14
          %p159 = scmp.lt.s32.totalorder %s158, 7
          %s160 = scalar_select %p159, %s158, 7
          %s161 = smul.addr %s160, 8
          %s162 = scalar_lea.vmem %s0, %s161
          %s163 = smul.u32 4, %s14
        $region28: #{tpu_custom_call.1} parent=23 // pred_fallthru
          _
      $region24: #{tpu_custom_call.1} parent=5 // pred_fallthru
        _
      %p164 = scmp.le.s32.totalorder 1, %s14
      %p165 = scmp.lt.s32.totalorder %s14, 3
      %p166 = pnand %p164, %p165
      %p167 = pneg %p166
      // Predicated region
      $region29: #{tpu_custom_call.1} parent=5 // pred_check
        _
      $region30: #{tpu_custom_call.1} parent=5 // pred_check_branch
        %169 = sbr.rel (%p166) target = $region32
      $region31: #{tpu_custom_call.1} parent=5 // pred_region
        %s170 = ssub.s32 %s14, 1
        // Predicated region
        $region33: #{tpu_custom_call.1} parent=31 // pred_check
          %p171 = pneg %p61
        $region34: #{tpu_custom_call.1} parent=31 // pred_check_branch
          %173 = sbr.rel (%p171) target = $region36
        $region35: #{tpu_custom_call.1} parent=31 // pred_region
          %175 = dma.done [#allocation3], 2304
        $region36: #{tpu_custom_call.1} parent=31 // pred_fallthru
          _
        // Predicated region
        $region37: #{tpu_custom_call.1} parent=31 // pred_check
          %p176 = pneg %p82
        $region38: #{tpu_custom_call.1} parent=31 // pred_check_branch
          %178 = sbr.rel (%p176) target = $region40
        $region39: #{tpu_custom_call.1} parent=31 // pred_region
          %180 = dma.done [#allocation6], 2304
        $region40: #{tpu_custom_call.1} parent=31 // pred_fallthru
          _
        %s181 = smul.u32 4, %s19
        %p182 = scmp.lt.s32.totalorder %s181, 7
        %s183 = scalar_select %p182, %s181, 7
        %s184 = smul.addr %s183, 8
        %s185 = scalar_lea.vmem %s0, %s184
        %p186 = pneg %p40
        %p187 = pneg %p37
        %p188 = pneg %p61
        %p189 = pneg %p58
        %p190 = pneg %p82
        %p191 = pneg %p79
        %p192 = pneg %p108
        %p193 = pneg %p105
        %s194 = sand.u32 %s95, 1
        %s195 = scalar_lea.sflag [#allocation4], %s194
        %s196 = sand.u32 %s95, 1
        %s197 = smul.addr %s196, 64
        %s198 = scalar_lea.vmem [#allocation7], %s197
        %s199 = smul.u32 4, %s19
        %p200 = scmp.lt.s32.totalorder %s199, 7
        %s201 = scalar_select %p200, %s199, 7
        %s202 = smul.addr %s201, 8
        %s203 = scalar_lea.vmem %s0, %s202
        %s204 = smul.u32 4, %s19
        %s205 = smul.u32 4, %s19
        %v206 = vld [vmem:[%s203] sm:$0xff]
        %v207 = vld [vmem:[%s203 + $0x8] sm:$0xff]
        %v208 = vld [vmem:[%s203 + $0x10] sm:$0xff]
        %v209 = vld [vmem:[%s203 + $0x18] sm:$0xff]
        %v210 = vlaneseq
        %v211 = vand.u32 %v210, 127
        %212 = vset.pattern.permute.xlu0 0
        %213 = vperm.xlu0 %212, %v206
        %v214 = vpop.permute.xlu0 %213
        %215 = vset.pattern.permute.xlu0 0
        %216 = vperm.xlu0 %215, %v207
        %v217 = vpop.permute.xlu0 %216
        %218 = vset.pattern.permute.xlu0 0
        %219 = vperm.xlu0 %218, %v208
        %v220 = vpop.permute.xlu0 %219
        %221 = vset.pattern.permute.xlu0 0
        %222 = vperm.xlu0 %221, %v209
        %v223 = vpop.permute.xlu0 %222
        %vm224 = vcmp.eq.s32.totalorder %v211, %v214
        %vm225 = vcmp.eq.s32.totalorder %v211, %v217
        %vm226 = vcmp.eq.s32.totalorder %v211, %v220
        %vm227 = vcmp.eq.s32.totalorder %v211, %v223
        %v228 = vsel %vm224, 1, 0
        %v229 = vsel %vm225, 1, 0
        %v230 = vsel %vm226, 1, 0
        %v231 = vsel %vm227, 1, 0
        %v232 = vcvt.s32.f32 %v228
        %v233 = vcvt.s32.f32 %v229
        %v234 = vcvt.s32.f32 %v230
        %v235 = vcvt.s32.f32 %v231
        %v236 = vadd.s32 %v206, 18
        %v237 = vadd.s32 %v207, 18
        %v238 = vadd.s32 %v208, 18
        %v239 = vadd.s32 %v209, 18
        %240 = vset.pattern.permute.xlu0 1
        %241 = vperm.xlu0 %240, %v236
        %v242 = vpop.permute.xlu0 %241
        %243 = vset.pattern.permute.xlu0 1
        %244 = vperm.xlu0 %243, %v237
        %v245 = vpop.permute.xlu0 %244
        %246 = vset.pattern.permute.xlu0 1
        %247 = vperm.xlu0 %246, %v238
        %v248 = vpop.permute.xlu0 %247
        %249 = vset.pattern.permute.xlu0 1
        %250 = vperm.xlu0 %249, %v239
        %v251 = vpop.permute.xlu0 %250
        %vm252 = vcmp.eq.s32.totalorder %v211, %v242
        %vm253 = vcmp.eq.s32.totalorder %v211, %v245
        %vm254 = vcmp.eq.s32.totalorder %v211, %v248
        %vm255 = vcmp.eq.s32.totalorder %v211, %v251
        %v256 = vsel %vm252, 1, 0
        %v257 = vsel %vm253, 1, 0
        %v258 = vsel %vm254, 1, 0
        %v259 = vsel %vm255, 1, 0
        %v260 = vcvt.s32.f32 %v256
        %v261 = vcvt.s32.f32 %v257
        %v262 = vcvt.s32.f32 %v258
        %v263 = vcvt.s32.f32 %v259
        %v264 = vadd.f32 %v232, %v260
        %v265 = vadd.f32 %v233, %v261
        %v266 = vadd.f32 %v234, %v262
        %v267 = vadd.f32 %v235, %v263
        %v268 = vadd.s32 %v206, 36
        %v269 = vadd.s32 %v207, 36
        %v270 = vadd.s32 %v208, 36
        %v271 = vadd.s32 %v209, 36
        %272 = vset.pattern.permute.xlu0 2
        %273 = vperm.xlu0 %272, %v268
        %v274 = vpop.permute.xlu0 %273
        %275 = vset.pattern.permute.xlu0 2
        %276 = vperm.xlu0 %275, %v269
        %v277 = vpop.permute.xlu0 %276
        %278 = vset.pattern.permute.xlu0 2
        %279 = vperm.xlu0 %278, %v270
        %v280 = vpop.permute.xlu0 %279
        %281 = vset.pattern.permute.xlu0 2
        %282 = vperm.xlu0 %281, %v271
        %v283 = vpop.permute.xlu0 %282
        %vm284 = vcmp.eq.s32.totalorder %v211, %v274
        %vm285 = vcmp.eq.s32.totalorder %v211, %v277
        %vm286 = vcmp.eq.s32.totalorder %v211, %v280
        %vm287 = vcmp.eq.s32.totalorder %v211, %v283
        %v288 = vsel %vm284, 1, 0
        %v289 = vsel %vm285, 1, 0
        %v290 = vsel %vm286, 1, 0
        %v291 = vsel %vm287, 1, 0
        %v292 = vcvt.s32.f32 %v288
        %v293 = vcvt.s32.f32 %v289
        %v294 = vcvt.s32.f32 %v290
        %v295 = vcvt.s32.f32 %v291
        %v296 = vadd.f32 %v264, %v292
        %v297 = vadd.f32 %v265, %v293
        %v298 = vadd.f32 %v266, %v294
        %v299 = vadd.f32 %v267, %v295
        %v300 = vadd.s32 %v206, 54
        %v301 = vadd.s32 %v207, 54
        %v302 = vadd.s32 %v208, 54
        %v303 = vadd.s32 %v209, 54
        %304 = vset.pattern.permute.xlu0 3
        %305 = vperm.xlu0 %304, %v300
        %v306 = vpop.permute.xlu0 %305
        %307 = vset.pattern.permute.xlu0 3
        %308 = vperm.xlu0 %307, %v301
        %v309 = vpop.permute.xlu0 %308
        %310 = vset.pattern.permute.xlu0 3
        %311 = vperm.xlu0 %310, %v302
        %v312 = vpop.permute.xlu0 %311
        %313 = vset.pattern.permute.xlu0 3
        %314 = vperm.xlu0 %313, %v303
        %v315 = vpop.permute.xlu0 %314
        %vm316 = vcmp.eq.s32.totalorder %v211, %v306
        %vm317 = vcmp.eq.s32.totalorder %v211, %v309
        %vm318 = vcmp.eq.s32.totalorder %v211, %v312
        %vm319 = vcmp.eq.s32.totalorder %v211, %v315
        %v320 = vsel %vm316, 1, 0
        %v321 = vsel %vm317, 1, 0
        %v322 = vsel %vm318, 1, 0
        %v323 = vsel %vm319, 1, 0
        %v324 = vcvt.s32.f32 %v320
        %v325 = vcvt.s32.f32 %v321
        %v326 = vcvt.s32.f32 %v322
        %v327 = vcvt.s32.f32 %v323
        %v328 = vadd.f32 %v296, %v324
        %v329 = vadd.f32 %v297, %v325
        %v330 = vadd.f32 %v298, %v326
        %v331 = vadd.f32 %v299, %v327
        %v332 = vld [vmem:[#allocation2] sm:$0xff]
        %v333 = vld [vmem:[#allocation2 + $0x8] sm:$0xff]
        %v334 = vld [vmem:[#allocation2 + $0x10] sm:$0xff]
        %v335 = vld [vmem:[#allocation2 + $0x18] sm:$0xff]
        %v336 = vld [vmem:[#allocation2 + $0x20] sm:$0xff]
        %v337 = vld [vmem:[#allocation2 + $0x28] sm:$0xff]
        %v338 = vld [vmem:[#allocation2 + $0x30] sm:$0xff]
        %v339 = vld [vmem:[#allocation2 + $0x38] sm:$0xff]
        %v340 = vld [vmem:[#allocation2 + $0x40] sm:$0xff]
        %v341 = vld [vmem:[#allocation2 + $0x48] sm:$0xff]
        %v342 = vld [vmem:[#allocation2 + $0x50] sm:$0xff]
        %v343 = vld [vmem:[#allocation2 + $0x58] sm:$0xff]
        %v344 = vld [vmem:[#allocation2 + $0x60] sm:$0xff]
        %v345 = vld [vmem:[#allocation2 + $0x68] sm:$0xff]
        %v346 = vld [vmem:[#allocation2 + $0x70] sm:$0xff]
        %v347 = vld [vmem:[#allocation2 + $0x78] sm:$0xff]
        %v348 = vld [vmem:[#allocation2 + $0x80] sm:$0xff]
        %v349 = vld [vmem:[#allocation2 + $0x88] sm:$0xff]
        %vm350 = vcmask 588800
        %v352 = vsel %vm350, %v328, 0
        %v355 = vsel %vm350, %v329, 0
        %v358 = vsel %vm350, %v330, 0
        %v361 = vsel %vm350, %v331, 0
        %363 = vmatpush.msra.mxu0 0.0
        %364 = vmatpush.msra.mxu0 0.0
        %365 = vmatpush.msra.mxu0 0.0
        %366 = vmatpush.msra.mxu0 0.0
        %367 = vmatpush.msra.mxu0 0.0
        %368 = vmatpush.msra.mxu0 0.0
        %369 = vmatpush.msra.mxu0 0.0
        %370 = vmatpush.msra.mxu0 %v348
        %371 = vmatpush.msra.mxu0 %v346
        %372 = vmatpush.msra.mxu0 %v344
        %373 = vmatpush.msra.mxu0 %v342
        %374 = vmatpush.msra.mxu0 %v340
        %375 = vmatpush.msra.mxu0 %v338
        %376 = vmatpush.msra.mxu0 %v336
        %377 = vmatpush.msra.mxu0 %v334
        %378 = vmatpush.msra.mxu0 %v332
        %379 = vmatmul.f32.gmra.mxu0 %v352
        %v380 = vpop.f32.mrf.mxu0
        %v381 = vadd.f32 0.0, %v380
        %382 = vmatmul.f32.gmra.mxu0 %v355
        %v383 = vpop.f32.mrf.mxu0
        %v384 = vadd.f32 0.0, %v383
        %385 = vmatmul.f32.gmra.mxu0 %v358
        %v386 = vpop.f32.mrf.mxu0
        %v387 = vadd.f32 0.0, %v386
        %388 = vmatmul.f32.gmra.mxu0 %v361
        %v389 = vpop.f32.mrf.mxu0
        %v390 = vadd.f32 0.0, %v389
        %391 = vdwg.mxu0
        %392 = vmatpush.msra.mxu0 0.0
        %393 = vmatpush.msra.mxu0 0.0
        %394 = vmatpush.msra.mxu0 0.0
        %395 = vmatpush.msra.mxu0 0.0
        %396 = vmatpush.msra.mxu0 0.0
        %397 = vmatpush.msra.mxu0 0.0
        %398 = vmatpush.msra.mxu0 0.0
        %399 = vmatpush.msra.mxu0 %v349
        %400 = vmatpush.msra.mxu0 %v347
        %401 = vmatpush.msra.mxu0 %v345
        %402 = vmatpush.msra.mxu0 %v343
        %403 = vmatpush.msra.mxu0 %v341
        %404 = vmatpush.msra.mxu0 %v339
        %405 = vmatpush.msra.mxu0 %v337
        %406 = vmatpush.msra.mxu0 %v335
        %407 = vmatpush.msra.mxu0 %v333
        %408 = vmatmul.f32.gmra.mxu0 %v352
        %v409 = vpop.f32.mrf.mxu0
        %v410 = vadd.f32 0.0, %v409
        %411 = vmatmul.f32.gmra.mxu0 %v355
        %v412 = vpop.f32.mrf.mxu0
        %v413 = vadd.f32 0.0, %v412
        %414 = vmatmul.f32.gmra.mxu0 %v358
        %v415 = vpop.f32.mrf.mxu0
        %v416 = vadd.f32 0.0, %v415
        %417 = vmatmul.f32.gmra.mxu0 %v361
        %v418 = vpop.f32.mrf.mxu0
        %v419 = vadd.f32 0.0, %v418
        %420 = vdwg.mxu0
        %v421 = vld [vmem:[#allocation5] sm:$0xff]
        %v422 = vld [vmem:[#allocation5 + $0x8] sm:$0xff]
        %v423 = vld [vmem:[#allocation5 + $0x10] sm:$0xff]
        %v424 = vld [vmem:[#allocation5 + $0x18] sm:$0xff]
        %v425 = vld [vmem:[#allocation5 + $0x20] sm:$0xff]
        %v426 = vld [vmem:[#allocation5 + $0x28] sm:$0xff]
        %v427 = vld [vmem:[#allocation5 + $0x30] sm:$0xff]
        %v428 = vld [vmem:[#allocation5 + $0x38] sm:$0xff]
        %v429 = vld [vmem:[#allocation5 + $0x40] sm:$0xff]
        %v430 = vld [vmem:[#allocation5 + $0x48] sm:$0xff]
        %v431 = vld [vmem:[#allocation5 + $0x50] sm:$0xff]
        %v432 = vld [vmem:[#allocation5 + $0x58] sm:$0xff]
        %v433 = vld [vmem:[#allocation5 + $0x60] sm:$0xff]
        %v434 = vld [vmem:[#allocation5 + $0x68] sm:$0xff]
        %v435 = vld [vmem:[#allocation5 + $0x70] sm:$0xff]
        %v436 = vld [vmem:[#allocation5 + $0x78] sm:$0xff]
        %v437 = vld [vmem:[#allocation5 + $0x80] sm:$0xff]
        %v438 = vld [vmem:[#allocation5 + $0x88] sm:$0xff]
        %439 = vmatpush.msra.mxu0 0.0
        %440 = vmatpush.msra.mxu0 0.0
        %441 = vmatpush.msra.mxu0 0.0
        %442 = vmatpush.msra.mxu0 0.0
        %443 = vmatpush.msra.mxu0 0.0
        %444 = vmatpush.msra.mxu0 0.0
        %445 = vmatpush.msra.mxu0 0.0
        %446 = vmatpush.msra.mxu0 %v437
        %447 = vmatpush.msra.mxu0 %v435
        %448 = vmatpush.msra.mxu0 %v433
        %449 = vmatpush.msra.mxu0 %v431
        %450 = vmatpush.msra.mxu0 %v429
        %451 = vmatpush.msra.mxu0 %v427
        %452 = vmatpush.msra.mxu0 %v425
        %453 = vmatpush.msra.mxu0 %v423
        %454 = vmatpush.msra.mxu0 %v421
        %455 = vmatmul.f32.gmra.mxu0 %v352
        %v456 = vpop.f32.mrf.mxu0
        %v457 = vadd.f32 0.0, %v456
        %458 = vmatmul.f32.gmra.mxu0 %v355
        %v459 = vpop.f32.mrf.mxu0
        %v460 = vadd.f32 0.0, %v459
        %461 = vmatmul.f32.gmra.mxu0 %v358
        %v462 = vpop.f32.mrf.mxu0
        %v463 = vadd.f32 0.0, %v462
        %464 = vmatmul.f32.gmra.mxu0 %v361
        %v465 = vpop.f32.mrf.mxu0
        %v466 = vadd.f32 0.0, %v465
        %467 = vdwg.mxu0
        %468 = vmatpush.msra.mxu0 0.0
        %469 = vmatpush.msra.mxu0 0.0
        %470 = vmatpush.msra.mxu0 0.0
        %471 = vmatpush.msra.mxu0 0.0
        %472 = vmatpush.msra.mxu0 0.0
        %473 = vmatpush.msra.mxu0 0.0
        %474 = vmatpush.msra.mxu0 0.0
        %475 = vmatpush.msra.mxu0 %v438
        %476 = vmatpush.msra.mxu0 %v436
        %477 = vmatpush.msra.mxu0 %v434
        %478 = vmatpush.msra.mxu0 %v432
        %479 = vmatpush.msra.mxu0 %v430
        %480 = vmatpush.msra.mxu0 %v428
        %481 = vmatpush.msra.mxu0 %v426
        %482 = vmatpush.msra.mxu0 %v424
        %483 = vmatpush.msra.mxu0 %v422
        %484 = vmatmul.f32.gmra.mxu0 %v352
        %v485 = vpop.f32.mrf.mxu0
        %v486 = vadd.f32 0.0, %v485
        %487 = vmatmul.f32.gmra.mxu0 %v355
        %v488 = vpop.f32.mrf.mxu0
        %v489 = vadd.f32 0.0, %v488
        %490 = vmatmul.f32.gmra.mxu0 %v358
        %v491 = vpop.f32.mrf.mxu0
        %v492 = vadd.f32 0.0, %v491
        %493 = vmatmul.f32.gmra.mxu0 %v361
        %v494 = vpop.f32.mrf.mxu0
        %v495 = vadd.f32 0.0, %v494
        %496 = vdwg.mxu0
        %v497 = vmul.f32 %v381, %v457
        %v498 = vmul.f32 %v410, %v486
        %v499 = vmul.f32 %v384, %v460
        %v500 = vmul.f32 %v413, %v489
        %v501 = vmul.f32 %v387, %v463
        %v502 = vmul.f32 %v416, %v492
        %v503 = vmul.f32 %v390, %v466
        %v504 = vmul.f32 %v419, %v495
        %505 = vst [vmem:[%s198] sm:$0xff] %v497
        %506 = vst [vmem:[%s198 + $0x8] sm:$0xff] %v498
        %507 = vst [vmem:[%s198 + $0x10] sm:$0xff] %v499
        %508 = vst [vmem:[%s198 + $0x18] sm:$0xff] %v500
        %509 = vst [vmem:[%s198 + $0x20] sm:$0xff] %v501
        %510 = vst [vmem:[%s198 + $0x28] sm:$0xff] %v502
        %511 = vst [vmem:[%s198 + $0x30] sm:$0xff] %v503
        %512 = vst [vmem:[%s198 + $0x38] sm:$0xff] %v504
        %s513 = sand.u32 %s95, 1
        %s514 = scalar_lea.sflag [#allocation4], %s513
        %s515 = sand.u32 %s95, 1
        %s516 = smul.addr %s515, 64
        %s517 = scalar_lea.vmem [#allocation7], %s516
        // Predicated region
        $region41: #{tpu_custom_call.1} parent=31 // pred_check
          %p518 = pneg %p105
        $region42: #{tpu_custom_call.1} parent=31 // pred_check_branch
          %520 = sbr.rel (%p518) target = $region44
        $region43: #{tpu_custom_call.1} parent=31 // pred_region
          %s521 = smul.u32 4, %s19
          %523 = vsyncadd %s514, 0
          %s524 = smul.addr %s521, 2
          %s525 = smul.addr %s524, 8
          %s526 = scalar_lea.hbm %s3, %s525
          %s527 = sshll.u32 %s517, 4
          %s528 = int_to_ptr.vmem [resolvable:$true] %s527
          %s529 = sshll.u32 %s526, 4
          %s530 = int_to_ptr.hbm [resolvable:$true] %s529
          %535 = dma.vmem_to_hbm [thread:$0]  %s528, 1024, %s530, %s514, 256, 256, 16
        $region44: #{tpu_custom_call.1} parent=31 // pred_fallthru
          _
      $region32: #{tpu_custom_call.1} parent=5 // pred_fallthru
        _
      %p536 = scmp.le.s32.totalorder 2, %s14
      // Predicated region
      $region45: #{tpu_custom_call.1} parent=5 // pred_check
        %p537 = pneg %p536
      $region46: #{tpu_custom_call.1} parent=5 // pred_check_branch
        %539 = sbr.rel (%p537) target = $region48
      $region47: #{tpu_custom_call.1} parent=5 // pred_region
        %s540 = ssub.s32 %s14, 2
        // Predicated region
        $region49: #{tpu_custom_call.1} parent=47 // pred_check
          %p541 = pneg %p111
        $region50: #{tpu_custom_call.1} parent=47 // pred_check_branch
          %543 = sbr.rel (%p541) target = $region52
        $region51: #{tpu_custom_call.1} parent=47 // pred_region
          %s544 = sand.u32 %s96, 1
          %s545 = scalar_lea.sflag [#allocation4], %s544
          %s546 = sand.u32 %s96, 1
          %s547 = smul.addr %s546, 64
          %s548 = scalar_lea.vmem [#allocation7], %s547
          %550 = dma.done %s545, 1024
        $region52: #{tpu_custom_call.1} parent=47 // pred_fallthru
          _
      $region48: #{tpu_custom_call.1} parent=5 // pred_fallthru
        _
    $region6: #{tpu_custom_call.1} parent=1 // loop_footer
      %s18 = sadd.s32 1, %s14
    $region7: #{tpu_custom_call.1} parent=1 // loop_footer_branch
      %13 = sbr.rel target = $region3
    $region8: #{tpu_custom_call.1} parent=1 // loop_exit
      _
    %551 = vsyncpa [#allocation3], 1
    %s552 = scalar_lea.sflag [#allocation3], 1
    %553 = vsyncpa %s552, 1
    %554 = vsyncpa [#allocation6], 1
    %555 = vsyncpa [#allocation4], 1
    %s556 = scalar_lea.sflag [#allocation4], 1
    %557 = vsyncpa %s556, 1

</llo_original>
